<compile_context>
chip_gen: v7x
topology: tpu7x:2x2x1
jax: 0.10.0
libtpu: 0.0.40
codegen_flags: <defaults>
</compile_context>

<pallas_src>
import functools

import jax
import jax.numpy as jnp
from jax.experimental import pallas as pl
from jax.experimental.pallas import tpu as pltpu

LANES = 128


def _focal_kernel(logits_ref, targets_ref, out_ref, acc_ref, *, alpha, gamma):
    # logits_ref  : (1, C, TR, 128)  probabilities, native dtype
    # targets_ref : (1, C, TR, 128)  one-hot, any dtype (int8 recommended)
    # out_ref     : (1, 1, 128)      f32 lane-partial focal-loss sums for this batch
    # acc_ref     : (TR, 128)        f32 accumulator, resident across the k axis
    k = pl.program_id(1)

    @pl.when(k == 0)
    def _():
        acc_ref[...] = jnp.zeros_like(acc_ref)

    C = logits_ref.shape[1]
    # pt = sum_c targets[c] * logits[c]  -- statically unrolled: pure VPU, full
    # (TR, 128) vreg density, no cross-sublane reduction.
    pt = logits_ref[0, 0].astype(jnp.float32) * targets_ref[0, 0].astype(jnp.float32)
    for c in range(1, C):
        pt = pt + (logits_ref[0, c].astype(jnp.float32)
                   * targets_ref[0, c].astype(jnp.float32))

    sub_pt = 1.0 - pt
    log_p = jnp.log(pt)                                   # EUP transcendental
    if float(gamma) == 2.0:
        w = sub_pt * sub_pt                               # avoid pow for default gamma
    else:
        w = jnp.power(sub_pt, jnp.float32(gamma))
    acc_ref[...] += (-float(alpha)) * w * log_p

    @pl.when(k == pl.num_programs(1) - 1)
    def _():
        # Single cross-sublane reduce per batch element; lanes reduced in the wrapper.
        out_ref[0] = jnp.sum(acc_ref[...], axis=0, keepdims=True)


def _pick_tile_rows(nr):
    # Multiples of 32 keep the block aligned for f32 / bf16 / int8 native tilings.
    for cand in (512, 256, 128, 64, 32):
        if nr % cand == 0:
            return cand
    return nr  # full spatial extent (always a legal block shape)


def focal_loss(logits, targets, *, gamma=2.0, alpha=0.8, size_average=True,
               tile_rows=None):
    """logits: (B, C, *spatial) probabilities; targets: same shape, one-hot."""
    B, C = logits.shape[:2]
    N = 1
    for d in logits.shape[2:]:
        N *= d
    assert N % LANES == 0, "spatial volume must be a multiple of 128 for lane tiling"
    NR = N // LANES

    if tile_rows is None:
        tile_rows = _pick_tile_rows(NR)
    assert NR % tile_rows == 0

    # No dtype upcast here: DMA native dtypes, cast to f32 inside the kernel.
    logits4 = logits.reshape(B, C, NR, LANES)
    targets4 = targets.reshape(B, C, NR, LANES)

    kernel = functools.partial(_focal_kernel, alpha=alpha, gamma=gamma)

    out = pl.pallas_call(
        kernel,
        out_shape=jax.ShapeDtypeStruct((B, 1, LANES), jnp.float32),
        grid_spec=pltpu.PrefetchScalarGridSpec(
            num_scalar_prefetch=0,
            grid=(B, NR // tile_rows),
            in_specs=[
                pl.BlockSpec((1, C, tile_rows, LANES), lambda b, k: (b, 0, k, 0)),
                pl.BlockSpec((1, C, tile_rows, LANES), lambda b, k: (b, 0, k, 0)),
            ],
            out_specs=pl.BlockSpec((1, 1, LANES), lambda b, k: (b, 0, 0)),
            scratch_shapes=[pltpu.VMEM((tile_rows, LANES), jnp.float32)],
        ),
        compiler_params=pltpu.CompilerParams(
            dimension_semantics=("parallel", "arbitrary"),
            vmem_limit_bytes=32 * 1024 * 1024),
    )(logits4, targets4)

    total = jnp.sum(out)              # fl.sum() over every voxel and batch element
    if size_average:
        return total / (B * N)        # fl.mean()
    return total


def _focal_loss_ref(logits, targets, gamma=2.0, alpha=0.8, size_average=True):
    """Pure-JAX reference mirroring the PyTorch FocalLoss.forward."""
    pt = jnp.sum(targets.astype(jnp.float32) * logits.astype(jnp.float32),
                 axis=1).reshape(-1, 1)
    log_p = jnp.log(pt)
    sub_pt = 1.0 - pt
    fl = -alpha * sub_pt ** gamma * log_p
    return jnp.mean(fl) if size_average else jnp.sum(fl)


if __name__ == "__main__":
    key = jax.random.PRNGKey(0)
    k1, k2 = jax.random.split(key)

    # Small 3D-UNet-style shapes: B=2, C=4, spatial 16x16x32 -> N=8192, NR=64.
    B, C, D, H, W = 2, 4, 16, 16, 32
    raw = jax.random.normal(k1, (B, C, D, H, W), dtype=jnp.float32)
    logits = jax.nn.softmax(raw, axis=1)                # module expects probabilities
    labels = jax.random.randint(k2, (B, D, H, W), 0, C, dtype=jnp.int32)
    onehot_f32 = jax.nn.one_hot(labels, C, axis=1, dtype=jnp.float32)
    onehot_i8 = onehot_f32.astype(jnp.int8)             # exact 0/1, 4x less HBM traffic

    # tile_rows=32 -> 2 spatial tiles per batch element (exercises the accumulator path).
    loss = focal_loss(logits, onehot_i8, tile_rows=32)
    loss = jax.block_until_ready(loss)

    ref = _focal_loss_ref(logits, onehot_f32)
    assert jnp.allclose(loss, ref, atol=1e-5, rtol=1e-4), (loss, ref)

    print("KERNEL_OK")
</pallas_src>

<mosaic_0001>
module attributes {stable_mosaic.version = 11 : i64} {
  func.func @_focal_kernel(%arg0: i32, %arg1: i32, %arg2: memref<1x4x32x128xf32, #tpu.memory_space<vmem>>, %arg3: memref<1x4x32x128xi8, #tpu.memory_space<vmem>>, %arg4: memref<1x1x128xf32, #tpu.memory_space<vmem>>, %arg5: memref<32x128xf32, #tpu.memory_space<vmem>>) attributes {dimension_semantics = [#tpu.dimension_semantics<parallel>, #tpu.dimension_semantics<arbitrary>], iteration_bounds = array<i64: 2, 2>, scalar_prefetch = 0 : i64, scratch_operands = 1 : i64, tpu.core_type = #tpu.core_type<tc>, window_params = [{transform_indices = @transform_0, window_bounds = array<i64: 1, 4, 32, 128>}, {transform_indices = @transform_1, window_bounds = array<i64: 1, 4, 32, 128>}, {transform_indices = @transform_2, window_bounds = array<i64: 1, 1, 128>}]} {
    %c0_i32 = arith.constant 0 : i32
    %0 = arith.cmpi eq, %arg1, %c0_i32 : i32
    %1 = arith.extui %0 : i1 to i32
    %c0_i32_0 = arith.constant 0 : i32
    %2 = arith.cmpi ne, %1, %c0_i32_0 : i32
    scf.if %2 {
      %cst_35 = arith.constant 0.000000e+00 : f32
      %43 = vector.broadcast %cst_35 : f32 to vector<32x128xf32>
      %c0_36 = arith.constant 0 : index
      %c0_37 = arith.constant 0 : index
      %44 = vector.load %arg5[%c0_36, %c0_37] : memref<32x128xf32, #tpu.memory_space<vmem>>, vector<32x128xf32>
      tpu.vector_store %arg5[%c0_36, %c0_37], %43 {strides = array<i32>} : memref<32x128xf32, #tpu.memory_space<vmem>>, vector<32x128xf32>,
    } else {
    }
    %c0 = arith.constant 0 : index
    %c0_1 = arith.constant 0 : index
    %c0_2 = arith.constant 0 : index
    %c0_3 = arith.constant 0 : index
    %3 = vector.load %arg2[%c0, %c0_1, %c0_2, %c0_3] : memref<1x4x32x128xf32, #tpu.memory_space<vmem>>, vector<1x1x32x128xf32>
    %4 = vector.shape_cast %3 : vector<1x1x32x128xf32> to vector<32x128xf32>
    %c0_4 = arith.constant 0 : index
    %c0_5 = arith.constant 0 : index
    %c0_6 = arith.constant 0 : index
    %c0_7 = arith.constant 0 : index
    %5 = vector.load %arg3[%c0_4, %c0_5, %c0_6, %c0_7] : memref<1x4x32x128xi8, #tpu.memory_space<vmem>>, vector<1x1x32x128xi8>
    %6 = vector.shape_cast %5 : vector<1x1x32x128xi8> to vector<32x128xi8>
    %7 = arith.sitofp %6 : vector<32x128xi8> to vector<32x128xf32>
    %8 = arith.mulf %4, %7 : vector<32x128xf32>
    %c0_8 = arith.constant 0 : index
    %c1 = arith.constant 1 : index
    %c0_9 = arith.constant 0 : index
    %c0_10 = arith.constant 0 : index
    %9 = vector.load %arg2[%c0_8, %c1, %c0_9, %c0_10] : memref<1x4x32x128xf32, #tpu.memory_space<vmem>>, vector<1x1x32x128xf32>
    %10 = vector.shape_cast %9 : vector<1x1x32x128xf32> to vector<32x128xf32>
    %c0_11 = arith.constant 0 : index
    %c1_12 = arith.constant 1 : index
    %c0_13 = arith.constant 0 : index
    %c0_14 = arith.constant 0 : index
    %11 = vector.load %arg3[%c0_11, %c1_12, %c0_13, %c0_14] : memref<1x4x32x128xi8, #tpu.memory_space<vmem>>, vector<1x1x32x128xi8>
    %12 = vector.shape_cast %11 : vector<1x1x32x128xi8> to vector<32x128xi8>
    %13 = arith.sitofp %12 : vector<32x128xi8> to vector<32x128xf32>
    %14 = arith.mulf %10, %13 : vector<32x128xf32>
    %15 = arith.addf %8, %14 : vector<32x128xf32>
    %c0_15 = arith.constant 0 : index
    %c2 = arith.constant 2 : index
    %c0_16 = arith.constant 0 : index
    %c0_17 = arith.constant 0 : index
    %16 = vector.load %arg2[%c0_15, %c2, %c0_16, %c0_17] : memref<1x4x32x128xf32, #tpu.memory_space<vmem>>, vector<1x1x32x128xf32>
    %17 = vector.shape_cast %16 : vector<1x1x32x128xf32> to vector<32x128xf32>
    %c0_18 = arith.constant 0 : index
    %c2_19 = arith.constant 2 : index
    %c0_20 = arith.constant 0 : index
    %c0_21 = arith.constant 0 : index
    %18 = vector.load %arg3[%c0_18, %c2_19, %c0_20, %c0_21] : memref<1x4x32x128xi8, #tpu.memory_space<vmem>>, vector<1x1x32x128xi8>
    %19 = vector.shape_cast %18 : vector<1x1x32x128xi8> to vector<32x128xi8>
    %20 = arith.sitofp %19 : vector<32x128xi8> to vector<32x128xf32>
    %21 = arith.mulf %17, %20 : vector<32x128xf32>
    %22 = arith.addf %15, %21 : vector<32x128xf32>
    %c0_22 = arith.constant 0 : index
    %c3 = arith.constant 3 : index
    %c0_23 = arith.constant 0 : index
    %c0_24 = arith.constant 0 : index
    %23 = vector.load %arg2[%c0_22, %c3, %c0_23, %c0_24] : memref<1x4x32x128xf32, #tpu.memory_space<vmem>>, vector<1x1x32x128xf32>
    %24 = vector.shape_cast %23 : vector<1x1x32x128xf32> to vector<32x128xf32>
    %c0_25 = arith.constant 0 : index
    %c3_26 = arith.constant 3 : index
    %c0_27 = arith.constant 0 : index
    %c0_28 = arith.constant 0 : index
    %25 = vector.load %arg3[%c0_25, %c3_26, %c0_27, %c0_28] : memref<1x4x32x128xi8, #tpu.memory_space<vmem>>, vector<1x1x32x128xi8>
    %26 = vector.shape_cast %25 : vector<1x1x32x128xi8> to vector<32x128xi8>
    %27 = arith.sitofp %26 : vector<32x128xi8> to vector<32x128xf32>
    %28 = arith.mulf %24, %27 : vector<32x128xf32>
    %29 = arith.addf %22, %28 : vector<32x128xf32>
    %cst = arith.constant 1.000000e+00 : f32
    %30 = vector.broadcast %cst : f32 to vector<32x128xf32>
    %31 = arith.subf %30, %29 : vector<32x128xf32>
    %32 = math.log %29 : vector<32x128xf32>
    %33 = arith.mulf %31, %31 : vector<32x128xf32>
    %c0_29 = arith.constant 0 : index
    %c0_30 = arith.constant 0 : index
    %34 = vector.load %arg5[%c0_29, %c0_30] : memref<32x128xf32, #tpu.memory_space<vmem>>, vector<32x128xf32>
    %cst_31 = arith.constant -8.000000e-01 : f32
    %35 = vector.broadcast %cst_31 : f32 to vector<32x128xf32>
    %36 = arith.mulf %35, %33 : vector<32x128xf32>
    %37 = arith.mulf %36, %32 : vector<32x128xf32>
    %38 = arith.addf %34, %37 : vector<32x128xf32>
    %c0_32 = arith.constant 0 : index
    %c0_33 = arith.constant 0 : index
    %39 = vector.load %arg5[%c0_32, %c0_33] : memref<32x128xf32, #tpu.memory_space<vmem>>, vector<32x128xf32>
    tpu.vector_store %arg5[%c0_32, %c0_33], %38 {strides = array<i32>} : memref<32x128xf32, #tpu.memory_space<vmem>>, vector<32x128xf32>,
    %c1_i32 = arith.constant 1 : i32
    %40 = arith.cmpi eq, %arg1, %c1_i32 : i32
    %41 = arith.extui %40 : i1 to i32
    %c0_i32_34 = arith.constant 0 : i32
    %42 = arith.cmpi ne, %41, %c0_i32_34 : i32
    scf.if %42 {
      %c0_35 = arith.constant 0 : index
      %c0_36 = arith.constant 0 : index
      %43 = vector.load %arg5[%c0_35, %c0_36] : memref<32x128xf32, #tpu.memory_space<vmem>>, vector<32x128xf32>
      %cst_37 = arith.constant dense<0.000000e+00> : vector<128xf32>
      %44 = vector.multi_reduction <add>, %43, %cst_37 [0] : vector<32x128xf32> to vector<128xf32>
      %45 = vector.shape_cast %44 : vector<128xf32> to vector<1x128xf32>
      %c0_38 = arith.constant 0 : index
      %c0_39 = arith.constant 0 : index
      %c0_40 = arith.constant 0 : index
      %46 = vector.load %arg4[%c0_38, %c0_39, %c0_40] : memref<1x1x128xf32, #tpu.memory_space<vmem>>, vector<1x1x128xf32>
      %47 = vector.shape_cast %46 : vector<1x1x128xf32> to vector<1x128xf32>
      %48 = vector.shape_cast %45 : vector<1x128xf32> to vector<1x1x128xf32>
      tpu.vector_store %arg4[%c0_38, %c0_39, %c0_40], %48 {strides = array<i32>} : memref<1x1x128xf32, #tpu.memory_space<vmem>>, vector<1x1x128xf32>,
    } else {
    }
    return
  }
  func.func @transform_0(%arg0: i32, %arg1: i32) -> (i32, i32, i32, i32) {
    %c0_i32 = arith.constant 0 : i32
    %c0_i32_0 = arith.constant 0 : i32
    %c0_i32_1 = arith.constant 0 : i32
    return %arg0, %c0_i32, %arg1, %c0_i32_0 : i32, i32, i32, i32
  }
  func.func @transform_1(%arg0: i32, %arg1: i32) -> (i32, i32, i32, i32) {
    %c0_i32 = arith.constant 0 : i32
    %c0_i32_0 = arith.constant 0 : i32
    %c0_i32_1 = arith.constant 0 : i32
    return %arg0, %c0_i32, %arg1, %c0_i32_0 : i32, i32, i32, i32
  }
  func.func @transform_2(%arg0: i32, %arg1: i32) -> (i32, i32, i32) {
    %c0_i32 = arith.constant 0 : i32
    %c0_i32_0 = arith.constant 0 : i32
    %c0_i32_1 = arith.constant 0 : i32
    return %arg0, %c0_i32, %c0_i32_0 : i32, i32, i32
  }
}

</mosaic_0001>

<llo_original>
// kernel: tpu_custom_call.1
$region0: #{tpu_custom_call.1}
  #allocation0 [shape = 'u32[]', space=smem, size = 0x4, offset = 0x4, fixed_abs, tag = 'smem constant byte address 0x4 - core index']
  #allocation1 [shape = 'u32[144,128]{1,0:T(1,128)}', space=vmem, size = 0x12000, scoped, tag = 'internal scratch']
  #allocation2 [shape = 'f32[32,128]{1,0:T(8,128)}', space=vmem, size = 0x4000, scoped, tag = 'scratch operand']
  #allocation9 [shape = 's32[]', space=sflag, size = 0x4, offset = 0, fixed_abs, tag = 'sflag constant byte address 0x0 - dummy sync flag']
  %s0 = inlined_call_operand.hbm [shape: f32[2,4,64,128], index: 0, kind: input, shape index: {}]
  %s1 = inlined_call_operand.hbm [shape: s8[2,4,64,128], index: 1, kind: input, shape index: {}]
  %s2 = inlined_call_operand.hbm [shape: f32[2,1,128], index: 2, kind: output, shape index: {}]
  %s3 = sld [smem:[#allocation0]]
  $region57: #{tpu_custom_call.1} parent=0
    _
  %s5 = ssub.s32 1, %s3
  %s6 = scalar_select 0, %s5, %s3
  $region1: #{tpu_custom_call.1} parent=0
    #allocation3 [shape = 'u8[131072]{0}', space=vmem, size = 0x20000, scoped, tag = 'input window, operand 0']
    #allocation4 [shape = 's32[2]{0}', space=sflag, size = 0x8, scoped, tag = 'scoped memory for tpu_custom_call.1']
    #allocation5 [shape = 's32[2]{0}', space=sflag, size = 0x8, scoped, tag = 'scoped memory for tpu_custom_call.1']
    #allocation6 [shape = 'u8[32768]{0}', space=vmem, size = 0x8000, scoped, tag = 'input window, operand 1']
    #allocation7 [shape = 's32[2]{0}', space=sflag, size = 0x8, scoped, tag = 'scoped memory for tpu_custom_call.1']
    #allocation8 [shape = 'u8[1024]{0}', space=vmem, size = 0x400, scoped, tag = 'output window, operand 0']
    %7 = vsyncpa [#allocation4], 0
    %s8 = scalar_lea.sflag [#allocation4], 1
    %9 = vsyncpa %s8, 0
    %10 = vsyncpa [#allocation7], 0
    %s11 = scalar_lea.sflag [#allocation7], 1
    %12 = vsyncpa %s11, 0
    %13 = vsyncpa [#allocation5], 0
    %s14 = scalar_lea.sflag [#allocation5], 1
    %15 = vsyncpa %s14, 0
    loop: start=0, step=1, limit=6
    $region2: #{tpu_custom_call.1} parent=1 // loop_pre_header
      _
    $region3: #{tpu_custom_call.1} parent=1 // loop_header
      %s17 = sphi 0, %s21
      %p18 = scmp.ge.s32.totalorder %s17, 6
      %s24 = sphi 0, %s36
      %s25 = sphi 0, %s32
      %s26 = sphi 0, %s24
      %s27 = sphi 0, %s25
      %s28 = sphi 0, %s26
      %s29 = sphi 0, %s27
      %s41 = sphi 0, %s43
      %s44 = sphi 0, %s41
      %s45 = sphi 0, %s44
      %s61 = sphi 0, %s45
      %s69 = sphi 0, %s71
      %s72 = sphi 0, %s69
      %s73 = sphi 0, %s72
      %s89 = sphi 0, %s73
      %s95 = sphi 0, %s97
      %s98 = sphi 0, %s95
      %s99 = sphi 0, %s98
      %s115 = sphi 0, %s99
    $region4: #{tpu_custom_call.1} parent=1 // loop_header_branch
      %20 = sbr.rel (%p18) target = $region8
    $region5: #{tpu_custom_call.1} parent=1 // loop_body
      %s22 = ssub.s32 %s17, 1
      %s23 = ssub.s32 %s17, 2
      %s30 = sadd.s32 1, %s25
      %p31 = scmp.ge.s32.totalorder %s30, 2
      %s32 = scalar_select %p31, 0, %s30
      %s33 = sadd.s32 1, %s24
      %s34 = scalar_select %p31, %s33, %s24
      %p35 = scmp.ge.s32.totalorder %s34, 2
      %s36 = scalar_select %p35, 0, %s34
      %s37 = ssub.s32 %s24, %s36
      %s38 = ssub.s32 %s25, %s32
      %s39 = sor.u32 %s37, %s38
      %p40 = scmp.eq.s32.totalorder %s39, 0
      %s42 = sadd.s32 %s41, 1
      %s43 = scalar_select %p40, %s41, %s42
      %p46 = pneg %p40
      %p47 = scmp.eq.s32.totalorder %s17, 3
      %p48 = por %p46, %p47
      %p49 = scmp.ne.s32.totalorder %s41, %s44
      %p50 = scmp.eq.s32.totalorder %s17, 0
      %p51 = por %p49, %p50
      %p52 = scmp.ne.s32.totalorder %s41, %s44
      %p53 = scmp.eq.s32.totalorder %s22, 3
      %p54 = por %p52, %p53
      %p55 = scmp.ne.s32.totalorder %s44, %s45
      %p56 = scmp.eq.s32.totalorder %s22, 0
      %p57 = por %p55, %p56
      %p58 = scmp.ne.s32.totalorder %s44, %s45
      %p59 = scmp.eq.s32.totalorder %s23, 3
      %p60 = por %p58, %p59
      %p62 = scmp.ne.s32.totalorder %s45, %s61
      %p63 = scmp.eq.s32.totalorder %s23, 0
      %p64 = por %p62, %p63
      %s65 = ssub.s32 %s24, %s36
      %s66 = ssub.s32 %s25, %s32
      %s67 = sor.u32 %s65, %s66
      %p68 = scmp.eq.s32.totalorder %s67, 0
      %s70 = sadd.s32 %s69, 1
      %s71 = scalar_select %p68, %s69, %s70
      %p74 = pneg %p68
      %p75 = scmp.eq.s32.totalorder %s17, 3
      %p76 = por %p74, %p75
      %p77 = scmp.ne.s32.totalorder %s69, %s72
      %p78 = scmp.eq.s32.totalorder %s17, 0
      %p79 = por %p77, %p78
      %p80 = scmp.ne.s32.totalorder %s69, %s72
      %p81 = scmp.eq.s32.totalorder %s22, 3
      %p82 = por %p80, %p81
      %p83 = scmp.ne.s32.totalorder %s72, %s73
      %p84 = scmp.eq.s32.totalorder %s22, 0
      %p85 = por %p83, %p84
      %p86 = scmp.ne.s32.totalorder %s72, %s73
      %p87 = scmp.eq.s32.totalorder %s23, 3
      %p88 = por %p86, %p87
      %p90 = scmp.ne.s32.totalorder %s73, %s89
      %p91 = scmp.eq.s32.totalorder %s23, 0
      %p92 = por %p90, %p91
      %s93 = ssub.s32 %s24, %s36
      %p94 = scmp.eq.s32.totalorder %s93, 0
      %s96 = sadd.s32 %s95, 1
      %s97 = scalar_select %p94, %s95, %s96
      %p100 = pneg %p94
      %p101 = scmp.eq.s32.totalorder %s17, 3
      %p102 = por %p100, %p101
      %p103 = scmp.ne.s32.totalorder %s95, %s98
      %p104 = scmp.eq.s32.totalorder %s17, 0
      %p105 = por %p103, %p104
      %p106 = scmp.ne.s32.totalorder %s95, %s98
      %p107 = scmp.eq.s32.totalorder %s22, 3
      %p108 = por %p106, %p107
      %p109 = scmp.ne.s32.totalorder %s98, %s99
      %p110 = scmp.eq.s32.totalorder %s22, 0
      %p111 = por %p109, %p110
      %p112 = scmp.ne.s32.totalorder %s98, %s99
      %p113 = scmp.eq.s32.totalorder %s23, 3
      %p114 = por %p112, %p113
      %p116 = scmp.ne.s32.totalorder %s99, %s115
      %p117 = scmp.eq.s32.totalorder %s23, 0
      %p118 = por %p116, %p117
      %p119 = scmp.le.s32.totalorder 1, %s17
      %p120 = scmp.lt.s32.totalorder %s17, 5
      %p121 = pnand %p119, %p120
      %p122 = pneg %p121
      // Predicated region
      $region9: #{tpu_custom_call.1} parent=5 // pred_check
        _
      $region10: #{tpu_custom_call.1} parent=5 // pred_check_branch
        %124 = sbr.rel (%p121) target = $region12
      $region11: #{tpu_custom_call.1} parent=5 // pred_region
        %s125 = ssub.s32 %s17, 1
      $region12: #{tpu_custom_call.1} parent=5 // pred_fallthru
        _
      %p126 = scmp.lt.s32.totalorder %s17, 4
      // Predicated region
      $region13: #{tpu_custom_call.1} parent=5 // pred_check
        %p127 = pneg %p126
      $region14: #{tpu_custom_call.1} parent=5 // pred_check_branch
        %129 = sbr.rel (%p127) target = $region16
      $region15: #{tpu_custom_call.1} parent=5 // pred_region
        // Predicated region
        $region17: #{tpu_custom_call.1} parent=15 // pred_check
          %p130 = pneg %p51
        $region18: #{tpu_custom_call.1} parent=15 // pred_check_branch
          %132 = sbr.rel (%p130) target = $region20
        $region19: #{tpu_custom_call.1} parent=15 // pred_region
          #allocation10 [shape = 'u32[6]{0}', space=smem, size = 0x18, scoped, tag = 'DMA stride descriptor']
          %s133 = sand.u32 %s41, 1
          %s134 = scalar_lea.sflag [#allocation4], %s133
          %s135 = sand.u32 %s41, 1
          %s136 = smul.addr %s135, 128
          %s137 = scalar_lea.vmem [#allocation3], %s136
          %s138 = smul.u32 4, %s25
          %s140 = ssub.s32 2048, 2048
          %141 = vsyncadd %s134, %s140
          %s142 = smul.addr %s24, 32
          %s143 = sadd.s32 %s138, %s142
          %s144 = smul.addr %s143, 128
          %s145 = scalar_lea.hbm %s0, %s144
          %s147 = sshll.u32 1, 14
          %s148 = sxor.u32 4294967295, %s147
          %s150 = sld [smem:[#allocation0]]
          %s151 = sadd.s32 2, %s150
          %s153 = sshll.u32 7, 26
          %s154 = sxor.u32 4294967295, %s153
          %s155 = sand.u32 0, %s154
          %s156 = sshll.u32 %s151, 26
          %s157 = sor.u32 %s155, %s156
          %s158 = sshll.u32 %s137, 4
          %s159 = int_to_ptr.vmem [resolvable:$true] %s158
          %165 = sst [smem:[#allocation10]] 1024
          %s166 = scalar_lea.smem [#allocation10], 1
          %167 = sst [smem:[%s166]] 512
          %s168 = scalar_lea.smem [#allocation10], 2
          %169 = sst [smem:[%s168]] 4
          %s170 = scalar_lea.smem [#allocation10], 3
          %171 = sst [smem:[%s170]] 128
          %s172 = scalar_lea.smem [#allocation10], 4
          %173 = sst [smem:[%s172]] 128
          %s174 = scalar_lea.smem [#allocation10], 5
          %175 = sst [smem:[%s174]] 8
          %177 = dma.general %s145, 2048, %s159, %s134, [#allocation9], [#allocation10], %s157, 0
        $region20: #{tpu_custom_call.1} parent=15 // pred_fallthru
          _
        // Predicated region
        $region21: #{tpu_custom_call.1} parent=15 // pred_check
          %p178 = pneg %p79
        $region22: #{tpu_custom_call.1} parent=15 // pred_check_branch
          %180 = sbr.rel (%p178) target = $region24
        $region23: #{tpu_custom_call.1} parent=15 // pred_region
          %s181 = sand.u32 %s69, 1
          %s182 = scalar_lea.sflag [#allocation7], %s181
          %s183 = sand.u32 %s69, 1
          %s184 = smul.addr %s183, 32
          %s185 = scalar_lea.vmem [#allocation6], %s184
          %s187 = ssub.s32 512, 512
          %188 = vsyncadd %s182, %s187
          %s189 = smul.addr %s24, 8
          %s190 = sadd.s32 %s25, %s189
          %s191 = smul.addr %s190, 128
          %s192 = scalar_lea.hbm %s1, %s191
          %s193 = sshll.u32 %s185, 4
          %s194 = int_to_ptr.vmem [resolvable:$true] %s193
          %199 = dma.hbm_to_vmem [thread:$0]  %s192, 512, %s194, %s182, 256, 128, 8
        $region24: #{tpu_custom_call.1} parent=15 // pred_fallthru
          _
      $region16: #{tpu_custom_call.1} parent=5 // pred_fallthru
        _
      %p200 = scmp.le.s32.totalorder 1, %s17
      %p201 = scmp.lt.s32.totalorder %s17, 5
      %p202 = pnand %p200, %p201
      %p203 = pneg %p202
      // Predicated region
      $region25: #{tpu_custom_call.1} parent=5 // pred_check
        _
      $region26: #{tpu_custom_call.1} parent=5 // pred_check_branch
        %205 = sbr.rel (%p202) target = $region28
      $region27: #{tpu_custom_call.1} parent=5 // pred_region
        %s206 = ssub.s32 %s17, 1
        %s207 = sand.u32 %s44, 1
        %s208 = scalar_lea.sflag [#allocation4], %s207
        %s209 = sand.u32 %s44, 1
        %s210 = smul.addr %s209, 128
        %s211 = scalar_lea.vmem [#allocation3], %s210
        // Predicated region
        $region29: #{tpu_custom_call.1} parent=27 // pred_check
          %p212 = pneg %p57
        $region30: #{tpu_custom_call.1} parent=27 // pred_check_branch
          %214 = sbr.rel (%p212) target = $region32
        $region31: #{tpu_custom_call.1} parent=27 // pred_region
          %215 = dma.done %s208, 2048
        $region32: #{tpu_custom_call.1} parent=27 // pred_fallthru
          _
        %s216 = sand.u32 %s72, 1
        %s217 = scalar_lea.sflag [#allocation7], %s216
        %s218 = sand.u32 %s72, 1
        %s219 = smul.addr %s218, 32
        %s220 = scalar_lea.vmem [#allocation6], %s219
        // Predicated region
        $region33: #{tpu_custom_call.1} parent=27 // pred_check
          %p221 = pneg %p85
        $region34: #{tpu_custom_call.1} parent=27 // pred_check_branch
          %223 = sbr.rel (%p221) target = $region36
        $region35: #{tpu_custom_call.1} parent=27 // pred_region
          %224 = dma.done %s217, 512
        $region36: #{tpu_custom_call.1} parent=27 // pred_fallthru
          _
        %s225 = sand.u32 %s44, 1
        %s226 = scalar_lea.sflag [#allocation4], %s225
        %s227 = sand.u32 %s44, 1
        %s228 = smul.addr %s227, 128
        %s229 = scalar_lea.vmem [#allocation3], %s228
        %p230 = pneg %p57
        %p231 = pneg %p54
        %s232 = sand.u32 %s72, 1
        %s233 = scalar_lea.sflag [#allocation7], %s232
        %s234 = sand.u32 %s72, 1
        %s235 = smul.addr %s234, 32
        %s236 = scalar_lea.vmem [#allocation6], %s235
        %p237 = pneg %p85
        %p238 = pneg %p82
        %p239 = pneg %p111
        %p240 = pneg %p108
        %s241 = sand.u32 %s98, 1
        %s242 = scalar_lea.sflag [#allocation5], %s241
        %s243 = sand.u32 %s98, 1
        %s244 = scalar_lea.vmem [#allocation8], %s243
        %s245 = smul.u32 4, %s27
        %p246 = scmp.eq.s32.totalorder %s27, 0
        // Predicated region
        $region37: #{tpu_custom_call.1} parent=27 // pred_check
          %p247 = pneg %p246
        $region38: #{tpu_custom_call.1} parent=27 // pred_check_branch
          %249 = sbr.rel (%p247) target = $region40
        $region39: #{tpu_custom_call.1} parent=27 // pred_region
          %250 = vst [vmem:[#allocation2] sm:$0xff] 0.0
          %251 = vst [vmem:[#allocation2 + $0x8] sm:$0xff] 0.0
          %252 = vst [vmem:[#allocation2 + $0x10] sm:$0xff] 0.0
          %253 = vst [vmem:[#allocation2 + $0x18] sm:$0xff] 0.0
        $region40: #{tpu_custom_call.1} parent=27 // pred_fallthru
          _
        %v254 = vld [vmem:[%s211] sm:$0xff]
        %v255 = vld [vmem:[%s211 + $0x8] sm:$0xff]
        %v256 = vld [vmem:[%s211 + $0x10] sm:$0xff]
        %v257 = vld [vmem:[%s211 + $0x18] sm:$0xff]
        %v258 = vld [vmem:[%s220] sm:$0xff]
        %v259 = vunpack.c.0.s8 %v258
        %v260 = vunpack.c.1.s8 %v258
        %v261 = vunpack.c.2.s8 %v258
        %v262 = vunpack.c.3.s8 %v258
        %v263 = vcvt.s32.f32 %v259
        %v264 = vcvt.s32.f32 %v260
        %v265 = vcvt.s32.f32 %v261
        %v266 = vcvt.s32.f32 %v262
        %v267 = vmul.f32 %v254, %v263
        %v268 = vmul.f32 %v255, %v264
        %v269 = vmul.f32 %v256, %v265
        %v270 = vmul.f32 %v257, %v266
        %s271 = scalar_lea.vmem %s211, 32 [#allocation3]
        %v272 = vld [vmem:[%s271] sm:$0xff]
        %v273 = vld [vmem:[%s271 + $0x8] sm:$0xff]
        %v274 = vld [vmem:[%s271 + $0x10] sm:$0xff]
        %v275 = vld [vmem:[%s271 + $0x18] sm:$0xff]
        %s276 = scalar_lea.vmem %s220, 8 [#allocation6]
        %v277 = vld [vmem:[%s276] sm:$0xff]
        %v278 = vunpack.c.0.s8 %v277
        %v279 = vunpack.c.1.s8 %v277
        %v280 = vunpack.c.2.s8 %v277
        %v281 = vunpack.c.3.s8 %v277
        %v282 = vcvt.s32.f32 %v278
        %v283 = vcvt.s32.f32 %v279
        %v284 = vcvt.s32.f32 %v280
        %v285 = vcvt.s32.f32 %v281
        %v286 = vmul.f32 %v272, %v282
        %v287 = vmul.f32 %v273, %v283
        %v288 = vmul.f32 %v274, %v284
        %v289 = vmul.f32 %v275, %v285
        %v290 = vadd.f32 %v267, %v286
        %v291 = vadd.f32 %v268, %v287
        %v292 = vadd.f32 %v269, %v288
        %v293 = vadd.f32 %v270, %v289
        %s294 = scalar_lea.vmem %s211, 64 [#allocation3]
        %v295 = vld [vmem:[%s294] sm:$0xff]
        %v296 = vld [vmem:[%s294 + $0x8] sm:$0xff]
        %v297 = vld [vmem:[%s294 + $0x10] sm:$0xff]
        %v298 = vld [vmem:[%s294 + $0x18] sm:$0xff]
        %s299 = scalar_lea.vmem %s220, 16 [#allocation6]
        %v300 = vld [vmem:[%s299] sm:$0xff]
        %v301 = vunpack.c.0.s8 %v300
        %v302 = vunpack.c.1.s8 %v300
        %v303 = vunpack.c.2.s8 %v300
        %v304 = vunpack.c.3.s8 %v300
        %v305 = vcvt.s32.f32 %v301
        %v306 = vcvt.s32.f32 %v302
        %v307 = vcvt.s32.f32 %v303
        %v308 = vcvt.s32.f32 %v304
        %v309 = vmul.f32 %v295, %v305
        %v310 = vmul.f32 %v296, %v306
        %v311 = vmul.f32 %v297, %v307
        %v312 = vmul.f32 %v298, %v308
        %v313 = vadd.f32 %v290, %v309
        %v314 = vadd.f32 %v291, %v310
        %v315 = vadd.f32 %v292, %v311
        %v316 = vadd.f32 %v293, %v312
        %s317 = scalar_lea.vmem %s211, 96 [#allocation3]
        %v318 = vld [vmem:[%s317] sm:$0xff]
        %v319 = vld [vmem:[%s317 + $0x8] sm:$0xff]
        %v320 = vld [vmem:[%s317 + $0x10] sm:$0xff]
        %v321 = vld [vmem:[%s317 + $0x18] sm:$0xff]
        %s322 = scalar_lea.vmem %s220, 24 [#allocation6]
        %v323 = vld [vmem:[%s322] sm:$0xff]
        %v324 = vunpack.c.0.s8 %v323
        %v325 = vunpack.c.1.s8 %v323
        %v326 = vunpack.c.2.s8 %v323
        %v327 = vunpack.c.3.s8 %v323
        %v328 = vcvt.s32.f32 %v324
        %v329 = vcvt.s32.f32 %v325
        %v330 = vcvt.s32.f32 %v326
        %v331 = vcvt.s32.f32 %v327
        %v332 = vmul.f32 %v318, %v328
        %v333 = vmul.f32 %v319, %v329
        %v334 = vmul.f32 %v320, %v330
        %v335 = vmul.f32 %v321, %v331
        %v336 = vadd.f32 %v313, %v332
        %v337 = vadd.f32 %v314, %v333
        %v338 = vadd.f32 %v315, %v334
        %v339 = vadd.f32 %v316, %v335
        %v340 = vsub.f32 1.0, %v336
        %v341 = vsub.f32 1.0, %v337
        %v342 = vsub.f32 1.0, %v338
        %v343 = vsub.f32 1.0, %v339
        %v344 = vlog2.pop %v336
        %v345 = vmul.f32 %v344, 0.6931472
        %v346 = vlog2.pop %v337
        %v347 = vmul.f32 %v346, 0.6931472
        %v348 = vlog2.pop %v338
        %v349 = vmul.f32 %v348, 0.6931472
        %v350 = vlog2.pop %v339
        %v351 = vmul.f32 %v350, 0.6931472
        %v352 = vmul.f32 %v340, %v340
        %v353 = vmul.f32 %v341, %v341
        %v354 = vmul.f32 %v342, %v342
        %v355 = vmul.f32 %v343, %v343
        %v356 = vld [vmem:[#allocation2] sm:$0xff]
        %v357 = vld [vmem:[#allocation2 + $0x8] sm:$0xff]
        %v358 = vld [vmem:[#allocation2 + $0x10] sm:$0xff]
        %v359 = vld [vmem:[#allocation2 + $0x18] sm:$0xff]
        %v360 = vmul.f32 %v352, -0.8
        %v361 = vmul.f32 %v353, -0.8
        %v362 = vmul.f32 %v354, -0.8
        %v363 = vmul.f32 %v355, -0.8
        %v364 = vmul.f32 %v360, %v345
        %v365 = vmul.f32 %v361, %v347
        %v366 = vmul.f32 %v362, %v349
        %v367 = vmul.f32 %v363, %v351
        %v368 = vadd.f32 %v356, %v364
        %v369 = vadd.f32 %v357, %v365
        %v370 = vadd.f32 %v358, %v366
        %v371 = vadd.f32 %v359, %v367
        %372 = vst [vmem:[#allocation2] sm:$0xff] %v368
        %373 = vst [vmem:[#allocation2 + $0x8] sm:$0xff] %v369
        %374 = vst [vmem:[#allocation2 + $0x10] sm:$0xff] %v370
        %375 = vst [vmem:[#allocation2 + $0x18] sm:$0xff] %v371
        %p376 = scmp.eq.s32.totalorder %s27, 1
        // Predicated region
        $region41: #{tpu_custom_call.1} parent=27 // pred_check
          %p377 = pneg %p376
        $region42: #{tpu_custom_call.1} parent=27 // pred_check_branch
          %379 = sbr.rel (%p377) target = $region44
        $region43: #{tpu_custom_call.1} parent=27 // pred_region
          %v380 = vld [vmem:[#allocation2] sm:$0xff]
          %v381 = vld [vmem:[#allocation2 + $0x8] sm:$0xff]
          %v382 = vld [vmem:[#allocation2 + $0x10] sm:$0xff]
          %v383 = vld [vmem:[#allocation2 + $0x18] sm:$0xff]
          %v384 = vadd.f32 %v380, %v381
          %v385 = vadd.f32 %v384, %v382
          %v386 = vadd.f32 %v385, %v383
          %v387 = vrot.slane %v386, 4
          %v388 = vadd.f32 %v386, %v387
          %v389 = vrot.slane %v388, 2
          %v390 = vadd.f32 %v388, %v389
          %v391 = vrot.slane %v390, 1
          %v392 = vadd.f32 %v390, %v391
          %393 = vst [vmem:[%s244] sm:$0x1] %v392
        $region44: #{tpu_custom_call.1} parent=27 // pred_fallthru
          _
        %s394 = sand.u32 %s98, 1
        %s395 = scalar_lea.sflag [#allocation5], %s394
        %s396 = sand.u32 %s98, 1
        %s397 = scalar_lea.vmem [#allocation8], %s396
        // Predicated region
        $region45: #{tpu_custom_call.1} parent=27 // pred_check
          %p398 = pneg %p108
        $region46: #{tpu_custom_call.1} parent=27 // pred_check_branch
          %400 = sbr.rel (%p398) target = $region48
        $region47: #{tpu_custom_call.1} parent=27 // pred_region
          %s402 = ssub.s32 16, 16
          %403 = vsyncadd %s395, %s402
          %s404 = smul.addr %s26, 16
          %s405 = scalar_lea.hbm %s2, %s404
          %s407 = sshll.u32 %s397, 4
          %s408 = int_to_ptr.vmem [resolvable:$true] %s407
          %410 = dma.vmem_to_hbm [thread:$0]  %s408, 16, %s405, %s395
        $region48: #{tpu_custom_call.1} parent=27 // pred_fallthru
          _
      $region28: #{tpu_custom_call.1} parent=5 // pred_fallthru
        _
      %p411 = scmp.le.s32.totalorder 2, %s17
      // Predicated region
      $region49: #{tpu_custom_call.1} parent=5 // pred_check
        %p412 = pneg %p411
      $region50: #{tpu_custom_call.1} parent=5 // pred_check_branch
        %414 = sbr.rel (%p412) target = $region52
      $region51: #{tpu_custom_call.1} parent=5 // pred_region
        %s415 = ssub.s32 %s17, 2
        // Predicated region
        $region53: #{tpu_custom_call.1} parent=51 // pred_check
          %p416 = pneg %p114
        $region54: #{tpu_custom_call.1} parent=51 // pred_check_branch
          %418 = sbr.rel (%p416) target = $region56
        $region55: #{tpu_custom_call.1} parent=51 // pred_region
          %s419 = sand.u32 %s99, 1
          %s420 = scalar_lea.sflag [#allocation5], %s419
          %s421 = sand.u32 %s99, 1
          %s422 = scalar_lea.vmem [#allocation8], %s421
          %423 = dma.done %s420, 16
        $region56: #{tpu_custom_call.1} parent=51 // pred_fallthru
          _
      $region52: #{tpu_custom_call.1} parent=5 // pred_fallthru
        _
    $region6: #{tpu_custom_call.1} parent=1 // loop_footer
      %s21 = sadd.s32 1, %s17
    $region7: #{tpu_custom_call.1} parent=1 // loop_footer_branch
      %16 = sbr.rel target = $region3
    $region8: #{tpu_custom_call.1} parent=1 // loop_exit
      _
    %424 = vsyncpa [#allocation4], 1
    %s425 = scalar_lea.sflag [#allocation4], 1
    %426 = vsyncpa %s425, 1
    %427 = vsyncpa [#allocation7], 1
    %s428 = scalar_lea.sflag [#allocation7], 1
    %429 = vsyncpa %s428, 1
    %430 = vsyncpa [#allocation5], 1
    %s431 = scalar_lea.sflag [#allocation5], 1
    %432 = vsyncpa %s431, 1

</llo_original>
